<compile_context>
chip_gen: v7x
topology: tpu7x:2x2x1
jax: 0.10.0
libtpu: 0.0.40
codegen_flags: <defaults>
</compile_context>

<pallas_src>
import functools
import math

import jax
import jax.numpy as jnp
from jax import lax
from jax.experimental import pallas as pl
from jax.experimental.pallas import tpu as pltpu


def _round_up(n, m):
    return (n + m - 1) // m * m


# ----------------------------------------------------------------------------
# Pallas kernel: one time block of one projected-LSTM layer.
# ----------------------------------------------------------------------------
def _lstm_layer_kernel(x_ref, w_ih_ref, w_comb_ref, w_hr_ref, b_ref,
                       y_ref,
                       gin_scr, htld_scr, h_scr, c_scr,
                       *, hidden_pad, mxu_dtype):
    Hp = hidden_pad
    t_blk, b_blk, d_pad = x_ref.shape

    # Zero-init the recurrent state at the first time block of each batch block.
    @pl.when(pl.program_id(1) == 0)
    def _init():
        h_scr[...] = jnp.zeros(h_scr.shape, h_scr.dtype)
        c_scr[...] = jnp.zeros(c_scr.shape, c_scr.dtype)

    # ---- Phase 1: hoisted input projection + bias for the whole time block --
    # One large (t_blk*b_blk, D) x (D, 4H) MXU matmul instead of t_blk tiny ones.
    x_flat = x_ref[...].reshape(t_blk * b_blk, d_pad)
    gin = jnp.dot(x_flat, w_ih_ref[...], preferred_element_type=jnp.float32)
    gin = gin + b_ref[...]                       # bias added once per block
    gin_scr[...] = gin.reshape(t_blk, b_blk, 4 * Hp)

    # ---- Phase 2: serial recurrence -----------------------------------------
    # Only one small matmul (h_tilde @ W_comb) remains on the per-step critical
    # path; W_comb = W_hr @ W_hh is precomputed in the wrapper so the carried
    # state is the un-projected h_tilde.
    def step(t, carry):
        h_prev = h_scr[...].astype(mxu_dtype)
        gates = gin_scr[t] + jnp.dot(h_prev, w_comb_ref[...],
                                     preferred_element_type=jnp.float32)
        i_g = jax.nn.sigmoid(gates[:, 0 * Hp:1 * Hp])   # lane-aligned slices
        f_g = jax.nn.sigmoid(gates[:, 1 * Hp:2 * Hp])
        g_g = jnp.tanh(gates[:, 2 * Hp:3 * Hp])
        o_g = jax.nn.sigmoid(gates[:, 3 * Hp:4 * Hp])
        c_t = f_g * c_scr[...] + i_g * g_g
        h_tilde = o_g * jnp.tanh(c_t)
        c_scr[...] = c_t
        h_scr[...] = h_tilde
        htld_scr[t] = h_tilde
        return carry

    lax.fori_loop(0, t_blk, step, 0)

    # ---- Phase 3: hoisted output projection (lane-dense store) --------------
    h_flat = htld_scr[...].reshape(t_blk * b_blk, Hp).astype(mxu_dtype)
    y = jnp.dot(h_flat, w_hr_ref[...], preferred_element_type=jnp.float32)
    y_ref[...] = y.reshape(t_blk, b_blk, y_ref.shape[2]).astype(y_ref.dtype)


# ----------------------------------------------------------------------------
# Wrapper: one projected-LSTM layer on TIME-MAJOR input (T, B, D) -> (T, B, P).
# ----------------------------------------------------------------------------
def lstm_layer_pallas(x_tm, w_ih, w_hh, w_hr, b_ih, b_hh, *,
                      hidden_size, proj_size,
                      t_block=64, batch_blocks=1, mxu_dtype=jnp.float32):
    T, B, D = x_tm.shape
    H, P = hidden_size, proj_size
    f32 = jnp.float32

    # Lane/sublane-aligned padded sizes.
    Hp = _round_up(H, 128)
    Pp = _round_up(P, 128)
    Dp = _round_up(D, 128)
    Bp = _round_up(B, 8)
    t_blk = max(1, min(t_block, T))
    Tp = _round_up(T, t_blk)

    # --- weight preprocessing: gate-blocked, zero-padded, transposed ---------
    def gate_pad_t(w, k, kp):            # (4H, k) -> (kp, 4*Hp), gates lane-aligned
        w4 = jnp.asarray(w, f32).reshape(4, H, k)
        w4 = jnp.transpose(w4, (2, 0, 1))                         # (k, 4, H)
        w4 = jnp.pad(w4, ((0, kp - k), (0, 0), (0, Hp - H)))
        return w4.reshape(kp, 4 * Hp)

    w_ih_t = gate_pad_t(w_ih, D, Dp)                              # (Dp, 4Hp)
    # W_comb = W_hr^T @ W_hh^T : lets the kernel carry un-projected h_tilde.
    w_comb = jnp.asarray(w_hr, f32).T @ jnp.asarray(w_hh, f32).T  # (H, 4H)
    w_comb = jnp.pad(w_comb.reshape(H, 4, H),
                     ((0, Hp - H), (0, 0), (0, Hp - H))).reshape(Hp, 4 * Hp)
    w_hr_t = jnp.pad(jnp.asarray(w_hr, f32).T,
                     ((0, Hp - H), (0, Pp - P)))                  # (Hp, Pp)
    bias = (jnp.asarray(b_ih, f32) + jnp.asarray(b_hh, f32)).reshape(4, H)
    bias = jnp.pad(bias, ((0, 0), (0, Hp - H))).reshape(1, 4 * Hp)

    # Zero-pad x; trailing time padding is causally harmless (sliced off below).
    x_pad = jnp.pad(x_tm.astype(f32), ((0, Tp - T), (0, Bp - B), (0, Dp - D)))

    # bf16 MXU operands halve VMEM/HBM traffic; state math stays f32 in-kernel.
    x_pad = x_pad.astype(mxu_dtype)
    w_ih_t = w_ih_t.astype(mxu_dtype)
    w_comb = w_comb.astype(mxu_dtype)
    w_hr_t = w_hr_t.astype(mxu_dtype)

    # Batch blocks: set batch_blocks=2 on v7x so both TensorCores get a share.
    groups = Bp // 8
    n_b = 1
    for d in range(min(batch_blocks, groups), 0, -1):
        if groups % d == 0:
            n_b = d
            break
    b_blk = Bp // n_b
    n_t = Tp // t_blk

    kernel = functools.partial(_lstm_layer_kernel, hidden_pad=Hp,
                               mxu_dtype=mxu_dtype)
    y_pad = pl.pallas_call(
        kernel,
        out_shape=jax.ShapeDtypeStruct((Tp, Bp, Pp), f32),
        grid=(n_b, n_t),
        in_specs=[
            pl.BlockSpec((t_blk, b_blk, Dp), lambda b, t: (t, b, 0)),
            pl.BlockSpec((Dp, 4 * Hp), lambda b, t: (0, 0)),   # grid-invariant
            pl.BlockSpec((Hp, 4 * Hp), lambda b, t: (0, 0)),   # grid-invariant
            pl.BlockSpec((Hp, Pp), lambda b, t: (0, 0)),       # grid-invariant
            pl.BlockSpec((1, 4 * Hp), lambda b, t: (0, 0)),    # grid-invariant
        ],
        out_specs=pl.BlockSpec((t_blk, b_blk, Pp), lambda b, t: (t, b, 0)),
        scratch_shapes=[
            pltpu.VMEM((t_blk, b_blk, 4 * Hp), f32),   # hoisted input gates
            pltpu.VMEM((t_blk, b_blk, Hp), f32),       # h_tilde history (block)
            pltpu.VMEM((b_blk, Hp), f32),              # h_tilde state
            pltpu.VMEM((b_blk, Hp), f32),              # c state
        ],
        compiler_params=pltpu.CompilerParams(
            dimension_semantics=("parallel", "arbitrary"),
            vmem_limit_bytes=48 * 1024 * 1024,
        ),
    )(x_pad, w_ih_t, w_comb, w_hr_t, bias)

    return y_pad[:T, :B, :P]


# ----------------------------------------------------------------------------
# Pure-JAX reference (faithful to the PyTorch LSTM math), time-major.
# ----------------------------------------------------------------------------
def lstm_layer_ref(x_tm, w_ih, w_hh, w_hr, b_ih, b_hh, *,
                   hidden_size, proj_size):
    T, B, _ = x_tm.shape
    H, P = hidden_size, proj_size
    b = (b_ih + b_hh)[None, :]

    def step(carry, x_t):
        h, c = carry
        gates = x_t @ w_ih.T + h @ w_hh.T + b
        i_g = jax.nn.sigmoid(gates[:, 0 * H:1 * H])
        f_g = jax.nn.sigmoid(gates[:, 1 * H:2 * H])
        g_g = jnp.tanh(gates[:, 2 * H:3 * H])
        o_g = jax.nn.sigmoid(gates[:, 3 * H:4 * H])
        c_t = f_g * c + i_g * g_g
        h_t = (o_g * jnp.tanh(c_t)) @ w_hr.T
        return (h_t, c_t), h_t

    h0 = jnp.zeros((B, P), jnp.float32)
    c0 = jnp.zeros((B, H), jnp.float32)
    _, ys = lax.scan(step, (h0, c0), x_tm.astype(jnp.float32))
    return ys


# ----------------------------------------------------------------------------
# RNNBottleneck forward (time-major across the whole stack) + param init.
# ----------------------------------------------------------------------------
def layer_input_sizes(input_size, hidden_size, proj_size, num_layers,
                      downsample_index, downsample_factor):
    sizes = []
    in_size = input_size
    for i in range(num_layers):
        if i == 0:
            pass
        elif i <= downsample_index:
            in_size = proj_size or hidden_size
        elif i == downsample_index + 1:
            in_size = (proj_size or hidden_size) * downsample_factor
        else:
            in_size = proj_size or hidden_size
        sizes.append(in_size)
    return sizes


def init_rnn_bottleneck_params(key, input_size, hidden_size, proj_size,
                               num_layers, downsample_index, downsample_factor):
    # PyTorch LSTM init: U(-1/sqrt(H), 1/sqrt(H)).
    # TODO(synk): proj_size == 0 (unprojected LSTM) variant not implemented
    # (the module defaults keep the projection active).
    assert 0 < proj_size < hidden_size
    k = 1.0 / math.sqrt(hidden_size)
    sizes = layer_input_sizes(input_size, hidden_size, proj_size, num_layers,
                              downsample_index, downsample_factor)
    params = []
    for i, in_size in enumerate(sizes):
        lk = jax.random.fold_in(key, i)
        ks = jax.random.split(lk, 5)
        params.append(dict(
            w_ih=jax.random.uniform(ks[0], (4 * hidden_size, in_size),
                                    jnp.float32, -k, k),
            w_hh=jax.random.uniform(ks[1], (4 * hidden_size, proj_size),
                                    jnp.float32, -k, k),
            w_hr=jax.random.uniform(ks[2], (proj_size, hidden_size),
                                    jnp.float32, -k, k),
            b_ih=jax.random.uniform(ks[3], (4 * hidden_size,),
                                    jnp.float32, -k, k),
            b_hh=jax.random.uniform(ks[4], (4 * hidden_size,),
                                    jnp.float32, -k, k),
        ))
    return params


def rnn_bottleneck_forward(x_btd, params, *, hidden_size, proj_size,
                           downsample_index, downsample_factor, layer_fn):
    # Transpose to time-major ONCE; all layers + downsample run time-major.
    x = jnp.transpose(x_btd, (1, 0, 2)).astype(jnp.float32)     # (T, B, D)
    for i, p in enumerate(params):
        x = layer_fn(x, p["w_ih"], p["w_hh"], p["w_hr"], p["b_ih"], p["b_hh"],
                     hidden_size=hidden_size, proj_size=proj_size)
        # dropout_prob == 0 -> nn.Dropout is the identity in forward.
        # TODO(synk): nonzero dropout_prob (training-mode Bernoulli mask) not implemented.
        if i == downsample_index:
            T, B, P = x.shape
            f = downsample_factor
            pad_len = f * math.ceil(T / f) - T
            x = jnp.pad(x, ((0, pad_len), (0, 0), (0, 0)))
            Tp = x.shape[0]
            # time-major equivalent of reshape((B, Tp//f, P*f)) in batch-first
            x = x.reshape(Tp // f, f, B, P).transpose(0, 2, 1, 3)
            x = x.reshape(Tp // f, B, f * P)
    return jnp.transpose(x, (1, 0, 2))                          # back to (B, T', D')


# ----------------------------------------------------------------------------
if __name__ == "__main__":
    B, T = 2, 11
    INPUT_SIZE, HIDDEN_SIZE, PROJ_SIZE = 16, 32, 16
    NUM_LAYERS, DS_INDEX, DS_FACTOR = 3, 1, 2

    key = jax.random.PRNGKey(0)
    k_x, k_p = jax.random.split(key)
    x = jax.random.normal(k_x, (B, T, INPUT_SIZE), jnp.float32)
    params = init_rnn_bottleneck_params(
        k_p, INPUT_SIZE, HIDDEN_SIZE, PROJ_SIZE, NUM_LAYERS, DS_INDEX, DS_FACTOR)

    fwd = functools.partial(
        rnn_bottleneck_forward, hidden_size=HIDDEN_SIZE, proj_size=PROJ_SIZE,
        downsample_index=DS_INDEX, downsample_factor=DS_FACTOR)

    # Pallas kernel, f32 MXU operands.  t_block=4 exercises the multi-time-block
    # grid and the h/c state carried across grid steps.
    pallas_f32 = functools.partial(lstm_layer_pallas, t_block=4,
                                   mxu_dtype=jnp.float32)
    out = jax.block_until_ready(fwd(x, params, layer_fn=pallas_f32))

    # Pure-JAX reference.
    ref = jax.block_until_ready(fwd(x, params, layer_fn=lstm_layer_ref))

    n_frames_out = math.ceil(T / DS_FACTOR)
    assert out.shape == (B, n_frames_out, PROJ_SIZE), out.shape
    assert out.shape == ref.shape, (out.shape, ref.shape)
    err_f32 = float(jnp.max(jnp.abs(out - ref)))
    # Default MXU precision + the W_comb = W_hr @ W_hh refactor decorrelate the
    # rounding slightly from the two-matmul reference; outputs are O(0.1).
    assert err_f32 < 1e-2, err_f32

    # bf16 MXU operands (state / gate nonlinearities stay f32 inside the kernel).
    pallas_bf16 = functools.partial(lstm_layer_pallas, t_block=4,
                                    mxu_dtype=jnp.bfloat16)
    out_bf16 = jax.block_until_ready(fwd(x, params, layer_fn=pallas_bf16))
    assert out_bf16.shape == ref.shape, (out_bf16.shape, ref.shape)
    err_bf16 = float(jnp.max(jnp.abs(out_bf16 - ref)))
    assert err_bf16 < 5e-2, err_bf16

    print("KERNEL_OK")
</pallas_src>

<mosaic_0001>
module attributes {stable_mosaic.version = 11 : i64} {
  func.func @_lstm_layer_kernel(%arg0: i32, %arg1: i32, %arg2: memref<4x8x128xf32, #tpu.memory_space<vmem>>, %arg3: memref<128x512xf32, #tpu.memory_space<vmem>>, %arg4: memref<128x512xf32, #tpu.memory_space<vmem>>, %arg5: memref<128x128xf32, #tpu.memory_space<vmem>>, %arg6: memref<1x512xf32, #tpu.memory_space<vmem>>, %arg7: memref<4x8x128xf32, #tpu.memory_space<vmem>>, %arg8: memref<4x8x512xf32, #tpu.memory_space<vmem>>, %arg9: memref<4x8x128xf32, #tpu.memory_space<vmem>>, %arg10: memref<8x128xf32, #tpu.memory_space<vmem>>, %arg11: memref<8x128xf32, #tpu.memory_space<vmem>>) attributes {dimension_semantics = [#tpu.dimension_semantics<parallel>, #tpu.dimension_semantics<arbitrary>], iteration_bounds = array<i64: 1, 3>, scalar_prefetch = 0 : i64, scratch_operands = 4 : i64, tpu.core_type = #tpu.core_type<tc>, window_params = [{transform_indices = @transform_0, window_bounds = array<i64: 4, 8, 128>}, {pipeline_mode = #tpu.pipeline_mode<synchronous>, transform_indices = @transform_1, window_bounds = array<i64: 128, 512>}, {pipeline_mode = #tpu.pipeline_mode<synchronous>, transform_indices = @transform_2, window_bounds = array<i64: 128, 512>}, {pipeline_mode = #tpu.pipeline_mode<synchronous>, transform_indices = @transform_3, window_bounds = array<i64: 128, 128>}, {pipeline_mode = #tpu.pipeline_mode<synchronous>, transform_indices = @transform_4, window_bounds = array<i64: 1, 512>}, {transform_indices = @transform_5, window_bounds = array<i64: 4, 8, 128>}]} {
    %c0_i32 = arith.constant 0 : i32
    %0 = arith.cmpi eq, %arg1, %c0_i32 : i32
    %1 = arith.extui %0 : i1 to i32
    %c0_i32_0 = arith.constant 0 : i32
    %2 = arith.cmpi ne, %1, %c0_i32_0 : i32
    scf.if %2 {
      %cst_21 = arith.constant 0.000000e+00 : f32
      %19 = vector.broadcast %cst_21 : f32 to vector<8x128xf32>
      %c0_22 = arith.constant 0 : index
      %c0_23 = arith.constant 0 : index
      %20 = vector.load %arg10[%c0_22, %c0_23] : memref<8x128xf32, #tpu.memory_space<vmem>>, vector<8x128xf32>
      tpu.vector_store %arg10[%c0_22, %c0_23], %19 {strides = array<i32>} : memref<8x128xf32, #tpu.memory_space<vmem>>, vector<8x128xf32>,
      %cst_24 = arith.constant 0.000000e+00 : f32
      %21 = vector.broadcast %cst_24 : f32 to vector<8x128xf32>
      %c0_25 = arith.constant 0 : index
      %c0_26 = arith.constant 0 : index
      %22 = vector.load %arg11[%c0_25, %c0_26] : memref<8x128xf32, #tpu.memory_space<vmem>>, vector<8x128xf32>
      tpu.vector_store %arg11[%c0_25, %c0_26], %21 {strides = array<i32>} : memref<8x128xf32, #tpu.memory_space<vmem>>, vector<8x128xf32>,
    } else {
    }
    %c0 = arith.constant 0 : index
    %c0_1 = arith.constant 0 : index
    %c0_2 = arith.constant 0 : index
    %3 = vector.load %arg2[%c0, %c0_1, %c0_2] : memref<4x8x128xf32, #tpu.memory_space<vmem>>, vector<4x8x128xf32>
    %4 = vector.shape_cast %3 : vector<4x8x128xf32> to vector<32x128xf32>
    %c0_3 = arith.constant 0 : index
    %c0_4 = arith.constant 0 : index
    %5 = vector.load %arg3[%c0_3, %c0_4] : memref<128x512xf32, #tpu.memory_space<vmem>>, vector<128x512xf32>
    %cst = arith.constant dense<0.000000e+00> : vector<32x512xf32>
    %6 = tpu.matmul %4, %5, %cst {dimension_numbers = #tpu.dot_dimension_numbers<[1], [0], [0], [1], [0, 0, 1, 1], [], []>} : vector<32x128xf32>, vector<128x512xf32>, vector<32x512xf32> -> vector<32x512xf32>
    %c0_5 = arith.constant 0 : index
    %c0_6 = arith.constant 0 : index
    %7 = vector.load %arg6[%c0_5, %c0_6] : memref<1x512xf32, #tpu.memory_space<vmem>>, vector<1x512xf32>
    %8 = vector.broadcast %7 : vector<1x512xf32> to vector<32x512xf32>
    %9 = arith.addf %6, %8 : vector<32x512xf32>
    %10 = vector.shape_cast %9 : vector<32x512xf32> to vector<4x8x512xf32>
    %c0_7 = arith.constant 0 : index
    %c0_8 = arith.constant 0 : index
    %c0_9 = arith.constant 0 : index
    %11 = vector.load %arg8[%c0_7, %c0_8, %c0_9] : memref<4x8x512xf32, #tpu.memory_space<vmem>>, vector<4x8x512xf32>
    tpu.vector_store %arg8[%c0_7, %c0_8, %c0_9], %10 {strides = array<i32>} : memref<4x8x512xf32, #tpu.memory_space<vmem>>, vector<4x8x512xf32>,
    %c0_i32_10 = arith.constant 0 : i32
    %c4_i32 = arith.constant 4 : i32
    %12 = arith.addi %c0_i32_10, %c4_i32 : i32
    %c1_i32 = arith.constant 1 : i32
    scf.for %arg12 = %c0_i32_10 to %12 step %c1_i32  : i32 {
      %c0_21 = arith.constant 0 : index
      %c0_22 = arith.constant 0 : index
      %19 = vector.load %arg10[%c0_21, %c0_22] : memref<8x128xf32, #tpu.memory_space<vmem>>, vector<8x128xf32>
      %20 = arith.index_cast %arg12 : i32 to index
      %c0_23 = arith.constant 0 : index
      %c0_24 = arith.constant 0 : index
      %21 = vector.load %arg8[%20, %c0_23, %c0_24] : memref<4x8x512xf32, #tpu.memory_space<vmem>>, vector<1x8x512xf32>
      %22 = vector.shape_cast %21 : vector<1x8x512xf32> to vector<8x512xf32>
      %c0_25 = arith.constant 0 : index
      %c0_26 = arith.constant 0 : index
      %23 = vector.load %arg4[%c0_25, %c0_26] : memref<128x512xf32, #tpu.memory_space<vmem>>, vector<128x512xf32>
      %cst_27 = arith.constant dense<0.000000e+00> : vector<8x512xf32>
      %24 = tpu.matmul %19, %23, %cst_27 {dimension_numbers = #tpu.dot_dimension_numbers<[1], [0], [0], [1], [0, 0, 1, 1], [], []>} : vector<8x128xf32>, vector<128x512xf32>, vector<8x512xf32> -> vector<8x512xf32>
      %25 = arith.addf %22, %24 : vector<8x512xf32>
      %26 = vector.extract_strided_slice %25 {offsets = [0, 0], sizes = [8, 128], strides = [1, 1]} : vector<8x512xf32> to vector<8x128xf32>
      %27 = arith.negf %26 : vector<8x128xf32>
      %28 = math.exp %27 : vector<8x128xf32>
      %cst_28 = arith.constant 1.000000e+00 : f32
      %29 = vector.broadcast %cst_28 : f32 to vector<8x128xf32>
      %30 = arith.addf %29, %28 : vector<8x128xf32>
      %31 = arith.divf %29, %30 : vector<8x128xf32>
      %32 = vector.extract_strided_slice %25 {offsets = [0, 128], sizes = [8, 128], strides = [1, 1]} : vector<8x512xf32> to vector<8x128xf32>
      %33 = arith.negf %32 : vector<8x128xf32>
      %34 = math.exp %33 : vector<8x128xf32>
      %cst_29 = arith.constant 1.000000e+00 : f32
      %35 = vector.broadcast %cst_29 : f32 to vector<8x128xf32>
      %36 = arith.addf %35, %34 : vector<8x128xf32>
      %37 = arith.divf %35, %36 : vector<8x128xf32>
      %38 = vector.extract_strided_slice %25 {offsets = [0, 256], sizes = [8, 128], strides = [1, 1]} : vector<8x512xf32> to vector<8x128xf32>
      %39 = math.tanh %38 : vector<8x128xf32>
      %40 = vector.extract_strided_slice %25 {offsets = [0, 384], sizes = [8, 128], strides = [1, 1]} : vector<8x512xf32> to vector<8x128xf32>
      %41 = arith.negf %40 : vector<8x128xf32>
      %42 = math.exp %41 : vector<8x128xf32>
      %cst_30 = arith.constant 1.000000e+00 : f32
      %43 = vector.broadcast %cst_30 : f32 to vector<8x128xf32>
      %44 = arith.addf %43, %42 : vector<8x128xf32>
      %45 = arith.divf %43, %44 : vector<8x128xf32>
      %c0_31 = arith.constant 0 : index
      %c0_32 = arith.constant 0 : index
      %46 = vector.load %arg11[%c0_31, %c0_32] : memref<8x128xf32, #tpu.memory_space<vmem>>, vector<8x128xf32>
      %47 = arith.mulf %37, %46 : vector<8x128xf32>
      %48 = arith.mulf %31, %39 : vector<8x128xf32>
      %49 = arith.addf %47, %48 : vector<8x128xf32>
      %50 = math.tanh %49 : vector<8x128xf32>
      %51 = arith.mulf %45, %50 : vector<8x128xf32>
      %c0_33 = arith.constant 0 : index
      %c0_34 = arith.constant 0 : index
      %52 = vector.load %arg11[%c0_33, %c0_34] : memref<8x128xf32, #tpu.memory_space<vmem>>, vector<8x128xf32>
      tpu.vector_store %arg11[%c0_33, %c0_34], %49 {strides = array<i32>} : memref<8x128xf32, #tpu.memory_space<vmem>>, vector<8x128xf32>,
      %c0_35 = arith.constant 0 : index
      %c0_36 = arith.constant 0 : index
      %53 = vector.load %arg10[%c0_35, %c0_36] : memref<8x128xf32, #tpu.memory_space<vmem>>, vector<8x128xf32>
      tpu.vector_store %arg10[%c0_35, %c0_36], %51 {strides = array<i32>} : memref<8x128xf32, #tpu.memory_space<vmem>>, vector<8x128xf32>,
      %54 = arith.index_cast %arg12 : i32 to index
      %c0_37 = arith.constant 0 : index
      %c0_38 = arith.constant 0 : index
      %55 = vector.load %arg9[%54, %c0_37, %c0_38] : memref<4x8x128xf32, #tpu.memory_space<vmem>>, vector<1x8x128xf32>
      %56 = vector.shape_cast %55 : vector<1x8x128xf32> to vector<8x128xf32>
      %57 = vector.shape_cast %51 : vector<8x128xf32> to vector<1x8x128xf32>
      tpu.vector_store %arg9[%54, %c0_37, %c0_38], %57 {strides = array<i32>} : memref<4x8x128xf32, #tpu.memory_space<vmem>>, vector<1x8x128xf32>,
    }
    %c4_i32_11 = arith.constant 4 : i32
    %c0_12 = arith.constant 0 : index
    %c0_13 = arith.constant 0 : index
    %c0_14 = arith.constant 0 : index
    %13 = vector.load %arg9[%c0_12, %c0_13, %c0_14] : memref<4x8x128xf32, #tpu.memory_space<vmem>>, vector<4x8x128xf32>
    %14 = vector.shape_cast %13 : vector<4x8x128xf32> to vector<32x128xf32>
    %c0_15 = arith.constant 0 : index
    %c0_16 = arith.constant 0 : index
    %15 = vector.load %arg5[%c0_15, %c0_16] : memref<128x128xf32, #tpu.memory_space<vmem>>, vector<128x128xf32>
    %cst_17 = arith.constant dense<0.000000e+00> : vector<32x128xf32>
    %16 = tpu.matmul %14, %15, %cst_17 {dimension_numbers = #tpu.dot_dimension_numbers<[1], [0], [0], [1], [0, 0, 1, 1], [], []>} : vector<32x128xf32>, vector<128x128xf32>, vector<32x128xf32> -> vector<32x128xf32>
    %17 = vector.shape_cast %16 : vector<32x128xf32> to vector<4x8x128xf32>
    %c0_18 = arith.constant 0 : index
    %c0_19 = arith.constant 0 : index
    %c0_20 = arith.constant 0 : index
    %18 = vector.load %arg7[%c0_18, %c0_19, %c0_20] : memref<4x8x128xf32, #tpu.memory_space<vmem>>, vector<4x8x128xf32>
    tpu.vector_store %arg7[%c0_18, %c0_19, %c0_20], %17 {strides = array<i32>} : memref<4x8x128xf32, #tpu.memory_space<vmem>>, vector<4x8x128xf32>,
    return
  }
  func.func @transform_0(%arg0: i32, %arg1: i32) -> (i32, i32, i32) {
    %c0_i32 = arith.constant 0 : i32
    %c0_i32_0 = arith.constant 0 : i32
    return %arg1, %arg0, %c0_i32 : i32, i32, i32
  }
  func.func @transform_1(%arg0: i32, %arg1: i32) -> (i32, i32) {
    %c0_i32 = arith.constant 0 : i32
    %c0_i32_0 = arith.constant 0 : i32
    %c0_i32_1 = arith.constant 0 : i32
    return %c0_i32, %c0_i32_0 : i32, i32
  }
  func.func @transform_2(%arg0: i32, %arg1: i32) -> (i32, i32) {
    %c0_i32 = arith.constant 0 : i32
    %c0_i32_0 = arith.constant 0 : i32
    %c0_i32_1 = arith.constant 0 : i32
    return %c0_i32, %c0_i32_0 : i32, i32
  }
  func.func @transform_3(%arg0: i32, %arg1: i32) -> (i32, i32) {
    %c0_i32 = arith.constant 0 : i32
    %c0_i32_0 = arith.constant 0 : i32
    %c0_i32_1 = arith.constant 0 : i32
    return %c0_i32, %c0_i32_0 : i32, i32
  }
  func.func @transform_4(%arg0: i32, %arg1: i32) -> (i32, i32) {
    %c0_i32 = arith.constant 0 : i32
    %c0_i32_0 = arith.constant 0 : i32
    %c0_i32_1 = arith.constant 0 : i32
    return %c0_i32, %c0_i32_0 : i32, i32
  }
  func.func @transform_5(%arg0: i32, %arg1: i32) -> (i32, i32, i32) {
    %c0_i32 = arith.constant 0 : i32
    %c0_i32_0 = arith.constant 0 : i32
    return %arg1, %arg0, %c0_i32 : i32, i32, i32
  }
}

</mosaic_0001>

<llo_original>
// kernel: tpu_custom_call.1
$region0: #{tpu_custom_call.1}
  #allocation0 [shape = 'u32[]', space=smem, size = 0x4, offset = 0x4, fixed_abs, tag = 'smem constant byte address 0x4 - core index']
  #allocation1 [shape = 'u32[144,128]{1,0:T(1,128)}', space=vmem, size = 0x12000, scoped, tag = 'internal scratch']
  #allocation2 [shape = 'f32[4,8,512]{2,1,0:T(8,128)}', space=vmem, size = 0x10000, scoped, tag = 'scratch operand']
  #allocation3 [shape = 'f32[4,8,128]{2,1,0:T(8,128)}', space=vmem, size = 0x4000, scoped, tag = 'scratch operand']
  #allocation4 [shape = 'f32[8,128]{1,0:T(8,128)}', space=vmem, size = 0x1000, scoped, tag = 'scratch operand']
  #allocation5 [shape = 'f32[8,128]{1,0:T(8,128)}', space=vmem, size = 0x1000, scoped, tag = 'scratch operand']
  %s0 = inlined_call_operand.hbm [shape: f32[12,8,128], index: 0, kind: input, shape index: {}]
  %s1 = inlined_call_operand.hbm [shape: f32[128,512], index: 1, kind: input, shape index: {}]
  %s2 = inlined_call_operand.hbm [shape: f32[128,512], index: 2, kind: input, shape index: {}]
  %s3 = inlined_call_operand.hbm [shape: f32[128,128], index: 3, kind: input, shape index: {}]
  %s4 = inlined_call_operand.vmem [shape: f32[1,512], index: 4, kind: input, shape index: {}]
  %s5 = inlined_call_operand.hbm [shape: f32[12,8,128], index: 5, kind: output, shape index: {}]
  %s6 = sld [smem:[#allocation0]]
  $region80: #{tpu_custom_call.1} parent=0
    _
  %s8 = ssub.s32 1, %s6
  %s9 = scalar_select 0, %s8, %s6
  $region1: #{tpu_custom_call.1} parent=0
    #allocation6 [shape = 'u8[32768]{0}', space=vmem, size = 0x8000, scoped, tag = 'input window, operand 0']
    #allocation7 [shape = 's32[2]{0}', space=sflag, size = 0x8, scoped, tag = 'scoped memory for tpu_custom_call.1']
    #allocation8 [shape = 's32[2]{0}', space=sflag, size = 0x8, scoped, tag = 'scoped memory for tpu_custom_call.1']
    #allocation9 [shape = 'u8[262144]{0}', space=vmem, size = 0x40000, scoped, tag = 'input window, operand 1, single buffered']
    #allocation10 [shape = 's32[1]{0}', space=sflag, size = 0x4, scoped, tag = 'scoped memory for tpu_custom_call.1']
    #allocation11 [shape = 'u8[262144]{0}', space=vmem, size = 0x40000, scoped, tag = 'input window, operand 2, single buffered']
    #allocation12 [shape = 'u8[65536]{0}', space=vmem, size = 0x10000, scoped, tag = 'input window, operand 3, single buffered']
    #allocation13 [shape = 's32[1]{0}', space=sflag, size = 0x4, scoped, tag = 'scoped memory for tpu_custom_call.1']
    #allocation14 [shape = 'u8[32768]{0}', space=vmem, size = 0x8000, scoped, tag = 'output window, operand 0']
    %10 = vsyncpa [#allocation7], 0
    %s11 = scalar_lea.sflag [#allocation7], 1
    %12 = vsyncpa %s11, 0
    %13 = vsyncpa [#allocation10], 0
    %14 = vsyncpa [#allocation13], 0
    %15 = vsyncpa [#allocation8], 0
    %s16 = scalar_lea.sflag [#allocation8], 1
    %17 = vsyncpa %s16, 0
    loop: start=0, step=1, limit=5
    $region2: #{tpu_custom_call.1} parent=1 // loop_pre_header
      _
    $region3: #{tpu_custom_call.1} parent=1 // loop_header
      %s19 = sphi 0, %s23
      %p20 = scmp.ge.s32.totalorder %s19, 5
      %s26 = sphi 0, %s38
      %s27 = sphi 0, %s34
      %s28 = sphi 0, %s26
      %s29 = sphi 0, %s27
      %s30 = sphi 0, %s28
      %s31 = sphi 0, %s29
      %s43 = sphi 0, %s45
      %s46 = sphi 0, %s43
      %s47 = sphi 0, %s46
      %s63 = sphi 0, %s47
      %s67 = sphi 0, %s67
      %s69 = sphi 0, %s67
      %s70 = sphi 0, %s69
      %s84 = sphi 0, %s70
      %s88 = sphi 0, %s88
      %s90 = sphi 0, %s88
      %s91 = sphi 0, %s90
      %s105 = sphi 0, %s91
      %s109 = sphi 0, %s109
      %s111 = sphi 0, %s109
      %s112 = sphi 0, %s111
      %s126 = sphi 0, %s112
      %s130 = sphi 0, %s130
      %s132 = sphi 0, %s130
      %s133 = sphi 0, %s132
      %s147 = sphi 0, %s133
      %s155 = sphi 0, %s157
      %s158 = sphi 0, %s155
      %s159 = sphi 0, %s158
      %s175 = sphi 0, %s159
    $region4: #{tpu_custom_call.1} parent=1 // loop_header_branch
      %22 = sbr.rel (%p20) target = $region8
    $region5: #{tpu_custom_call.1} parent=1 // loop_body
      %s24 = ssub.s32 %s19, 1
      %s25 = ssub.s32 %s19, 2
      %s32 = sadd.s32 1, %s27
      %p33 = scmp.ge.s32.totalorder %s32, 3
      %s34 = scalar_select %p33, 0, %s32
      %s35 = sadd.s32 1, %s26
      %s36 = scalar_select %p33, %s35, %s26
      %p37 = scmp.ge.s32.totalorder %s36, 1
      %s38 = scalar_select %p37, 0, %s36
      %s39 = ssub.s32 %s27, %s34
      %s40 = ssub.s32 %s26, %s38
      %s41 = sor.u32 %s39, %s40
      %p42 = scmp.eq.s32.totalorder %s41, 0
      %s44 = sadd.s32 %s43, 1
      %s45 = scalar_select %p42, %s43, %s44
      %p48 = pneg %p42
      %p49 = scmp.eq.s32.totalorder %s19, 2
      %p50 = por %p48, %p49
      %p51 = scmp.ne.s32.totalorder %s43, %s46
      %p52 = scmp.eq.s32.totalorder %s19, 0
      %p53 = por %p51, %p52
      %p54 = scmp.ne.s32.totalorder %s43, %s46
      %p55 = scmp.eq.s32.totalorder %s24, 2
      %p56 = por %p54, %p55
      %p57 = scmp.ne.s32.totalorder %s46, %s47
      %p58 = scmp.eq.s32.totalorder %s24, 0
      %p59 = por %p57, %p58
      %p60 = scmp.ne.s32.totalorder %s46, %s47
      %p61 = scmp.eq.s32.totalorder %s25, 2
      %p62 = por %p60, %p61
      %p64 = scmp.ne.s32.totalorder %s47, %s63
      %p65 = scmp.eq.s32.totalorder %s25, 0
      %p66 = por %p64, %p65
      %s68 = sadd.s32 %s67, 1
      %p71 = scmp.eq.s32.totalorder %s19, 2
      %p72 = scmp.ne.s32.totalorder %s67, %s69
      %p73 = scmp.eq.s32.totalorder %s19, 0
      %p74 = por %p72, %p73
      %p75 = scmp.ne.s32.totalorder %s67, %s69
      %p76 = scmp.eq.s32.totalorder %s24, 2
      %p77 = por %p75, %p76
      %p78 = scmp.ne.s32.totalorder %s69, %s70
      %p79 = scmp.eq.s32.totalorder %s24, 0
      %p80 = por %p78, %p79
      %p81 = scmp.ne.s32.totalorder %s69, %s70
      %p82 = scmp.eq.s32.totalorder %s25, 2
      %p83 = por %p81, %p82
      %p85 = scmp.ne.s32.totalorder %s70, %s84
      %p86 = scmp.eq.s32.totalorder %s25, 0
      %p87 = por %p85, %p86
      %s89 = sadd.s32 %s88, 1
      %p92 = scmp.eq.s32.totalorder %s19, 2
      %p93 = scmp.ne.s32.totalorder %s88, %s90
      %p94 = scmp.eq.s32.totalorder %s19, 0
      %p95 = por %p93, %p94
      %p96 = scmp.ne.s32.totalorder %s88, %s90
      %p97 = scmp.eq.s32.totalorder %s24, 2
      %p98 = por %p96, %p97
      %p99 = scmp.ne.s32.totalorder %s90, %s91
      %p100 = scmp.eq.s32.totalorder %s24, 0
      %p101 = por %p99, %p100
      %p102 = scmp.ne.s32.totalorder %s90, %s91
      %p103 = scmp.eq.s32.totalorder %s25, 2
      %p104 = por %p102, %p103
      %p106 = scmp.ne.s32.totalorder %s91, %s105
      %p107 = scmp.eq.s32.totalorder %s25, 0
      %p108 = por %p106, %p107
      %s110 = sadd.s32 %s109, 1
      %p113 = scmp.eq.s32.totalorder %s19, 2
      %p114 = scmp.ne.s32.totalorder %s109, %s111
      %p115 = scmp.eq.s32.totalorder %s19, 0
      %p116 = por %p114, %p115
      %p117 = scmp.ne.s32.totalorder %s109, %s111
      %p118 = scmp.eq.s32.totalorder %s24, 2
      %p119 = por %p117, %p118
      %p120 = scmp.ne.s32.totalorder %s111, %s112
      %p121 = scmp.eq.s32.totalorder %s24, 0
      %p122 = por %p120, %p121
      %p123 = scmp.ne.s32.totalorder %s111, %s112
      %p124 = scmp.eq.s32.totalorder %s25, 2
      %p125 = por %p123, %p124
      %p127 = scmp.ne.s32.totalorder %s112, %s126
      %p128 = scmp.eq.s32.totalorder %s25, 0
      %p129 = por %p127, %p128
      %s131 = sadd.s32 %s130, 1
      %p134 = scmp.eq.s32.totalorder %s19, 2
      %p135 = scmp.ne.s32.totalorder %s130, %s132
      %p136 = scmp.eq.s32.totalorder %s19, 0
      %p137 = por %p135, %p136
      %p138 = scmp.ne.s32.totalorder %s130, %s132
      %p139 = scmp.eq.s32.totalorder %s24, 2
      %p140 = por %p138, %p139
      %p141 = scmp.ne.s32.totalorder %s132, %s133
      %p142 = scmp.eq.s32.totalorder %s24, 0
      %p143 = por %p141, %p142
      %p144 = scmp.ne.s32.totalorder %s132, %s133
      %p145 = scmp.eq.s32.totalorder %s25, 2
      %p146 = por %p144, %p145
      %p148 = scmp.ne.s32.totalorder %s133, %s147
      %p149 = scmp.eq.s32.totalorder %s25, 0
      %p150 = por %p148, %p149
      %s151 = ssub.s32 %s27, %s34
      %s152 = ssub.s32 %s26, %s38
      %s153 = sor.u32 %s151, %s152
      %p154 = scmp.eq.s32.totalorder %s153, 0
      %s156 = sadd.s32 %s155, 1
      %s157 = scalar_select %p154, %s155, %s156
      %p160 = pneg %p154
      %p161 = scmp.eq.s32.totalorder %s19, 2
      %p162 = por %p160, %p161
      %p163 = scmp.ne.s32.totalorder %s155, %s158
      %p164 = scmp.eq.s32.totalorder %s19, 0
      %p165 = por %p163, %p164
      %p166 = scmp.ne.s32.totalorder %s155, %s158
      %p167 = scmp.eq.s32.totalorder %s24, 2
      %p168 = por %p166, %p167
      %p169 = scmp.ne.s32.totalorder %s158, %s159
      %p170 = scmp.eq.s32.totalorder %s24, 0
      %p171 = por %p169, %p170
      %p172 = scmp.ne.s32.totalorder %s158, %s159
      %p173 = scmp.eq.s32.totalorder %s25, 2
      %p174 = por %p172, %p173
      %p176 = scmp.ne.s32.totalorder %s159, %s175
      %p177 = scmp.eq.s32.totalorder %s25, 0
      %p178 = por %p176, %p177
      %p179 = scmp.le.s32.totalorder 1, %s19
      %p180 = scmp.lt.s32.totalorder %s19, 4
      %p181 = pnand %p179, %p180
      %p182 = pneg %p181
      // Predicated region
      $region9: #{tpu_custom_call.1} parent=5 // pred_check
        _
      $region10: #{tpu_custom_call.1} parent=5 // pred_check_branch
        %184 = sbr.rel (%p181) target = $region12
      $region11: #{tpu_custom_call.1} parent=5 // pred_region
        %s185 = ssub.s32 %s19, 1
        // Predicated region
        $region13: #{tpu_custom_call.1} parent=11 // pred_check
          %p186 = pneg %p80
        $region14: #{tpu_custom_call.1} parent=11 // pred_check_branch
          %188 = sbr.rel (%p186) target = $region16
        $region15: #{tpu_custom_call.1} parent=11 // pred_region
          %s190 = ssub.s32 8192, 8192
          %191 = vsyncadd [#allocation10], %s190
          %s192 = sshll.u32 [#allocation9], 4
          %s193 = int_to_ptr.vmem [resolvable:$true] %s192
          %198 = dma.hbm_to_vmem [thread:$0]  %s1, 8192, %s193, [#allocation10], 512, 512, 32
        $region16: #{tpu_custom_call.1} parent=11 // pred_fallthru
          _
        // Predicated region
        $region17: #{tpu_custom_call.1} parent=11 // pred_check
          %p199 = pneg %p101
        $region18: #{tpu_custom_call.1} parent=11 // pred_check_branch
          %201 = sbr.rel (%p199) target = $region20
        $region19: #{tpu_custom_call.1} parent=11 // pred_region
          %s203 = ssub.s32 8192, 8192
          %204 = vsyncadd [#allocation10], %s203
          %s205 = sshll.u32 [#allocation11], 4
          %s206 = int_to_ptr.vmem [resolvable:$true] %s205
          %211 = dma.hbm_to_vmem [thread:$0]  %s2, 8192, %s206, [#allocation10], 512, 512, 32
        $region20: #{tpu_custom_call.1} parent=11 // pred_fallthru
          _
        // Predicated region
        $region21: #{tpu_custom_call.1} parent=11 // pred_check
          %p212 = pneg %p122
        $region22: #{tpu_custom_call.1} parent=11 // pred_check_branch
          %214 = sbr.rel (%p212) target = $region24
        $region23: #{tpu_custom_call.1} parent=11 // pred_region
          %s216 = ssub.s32 2048, 2048
          %217 = vsyncadd [#allocation13], %s216
          %s218 = sshll.u32 [#allocation12], 4
          %s219 = int_to_ptr.vmem [resolvable:$true] %s218
          %224 = dma.hbm_to_vmem [thread:$0]  %s3, 2048, %s219, [#allocation13], 128, 128, 8
        $region24: #{tpu_custom_call.1} parent=11 // pred_fallthru
          _
        // Predicated region
        $region25: #{tpu_custom_call.1} parent=11 // pred_check
          %p225 = pneg %p143
        $region26: #{tpu_custom_call.1} parent=11 // pred_check_branch
          %227 = sbr.rel (%p225) target = $region28
        $region27: #{tpu_custom_call.1} parent=11 // pred_region
          _
        $region28: #{tpu_custom_call.1} parent=11 // pred_fallthru
          _
      $region12: #{tpu_custom_call.1} parent=5 // pred_fallthru
        _
      %p228 = scmp.lt.s32.totalorder %s19, 3
      // Predicated region
      $region29: #{tpu_custom_call.1} parent=5 // pred_check
        %p229 = pneg %p228
      $region30: #{tpu_custom_call.1} parent=5 // pred_check_branch
        %231 = sbr.rel (%p229) target = $region32
      $region31: #{tpu_custom_call.1} parent=5 // pred_region
        // Predicated region
        $region33: #{tpu_custom_call.1} parent=31 // pred_check
          %p232 = pneg %p53
        $region34: #{tpu_custom_call.1} parent=31 // pred_check_branch
          %234 = sbr.rel (%p232) target = $region36
        $region35: #{tpu_custom_call.1} parent=31 // pred_region
          %s235 = sand.u32 %s43, 1
          %s236 = scalar_lea.sflag [#allocation7], %s235
          %s237 = sand.u32 %s43, 1
          %s238 = smul.addr %s237, 32
          %s239 = scalar_lea.vmem [#allocation6], %s238
          %s240 = smul.u32 4, %s27
          %s242 = ssub.s32 512, 512
          %243 = vsyncadd %s236, %s242
          %s244 = sadd.s32 %s26, %s240
          %s245 = smul.addr %s244, 128
          %s246 = scalar_lea.hbm %s0, %s245
          %s247 = sshll.u32 %s239, 4
          %s248 = int_to_ptr.vmem [resolvable:$true] %s247
          %253 = dma.hbm_to_vmem [thread:$0]  %s246, 512, %s248, %s236, 128, 128, 8
        $region36: #{tpu_custom_call.1} parent=31 // pred_fallthru
          _
      $region32: #{tpu_custom_call.1} parent=5 // pred_fallthru
        _
      %p254 = scmp.le.s32.totalorder 1, %s19
      %p255 = scmp.lt.s32.totalorder %s19, 4
      %p256 = pnand %p254, %p255
      %p257 = pneg %p256
      // Predicated region
      $region37: #{tpu_custom_call.1} parent=5 // pred_check
        _
      $region38: #{tpu_custom_call.1} parent=5 // pred_check_branch
        %259 = sbr.rel (%p256) target = $region40
      $region39: #{tpu_custom_call.1} parent=5 // pred_region
        %s260 = ssub.s32 %s19, 1
        %s261 = sand.u32 %s46, 1
        %s262 = scalar_lea.sflag [#allocation7], %s261
        %s263 = sand.u32 %s46, 1
        %s264 = smul.addr %s263, 32
        %s265 = scalar_lea.vmem [#allocation6], %s264
        // Predicated region
        $region41: #{tpu_custom_call.1} parent=39 // pred_check
          %p266 = pneg %p59
        $region42: #{tpu_custom_call.1} parent=39 // pred_check_branch
          %268 = sbr.rel (%p266) target = $region44
        $region43: #{tpu_custom_call.1} parent=39 // pred_region
          %269 = dma.done %s262, 512
        $region44: #{tpu_custom_call.1} parent=39 // pred_fallthru
          _
        // Predicated region
        $region45: #{tpu_custom_call.1} parent=39 // pred_check
          %p270 = pneg %p80
        $region46: #{tpu_custom_call.1} parent=39 // pred_check_branch
          %272 = sbr.rel (%p270) target = $region48
        $region47: #{tpu_custom_call.1} parent=39 // pred_region
          %273 = dma.done [#allocation10], 8192
        $region48: #{tpu_custom_call.1} parent=39 // pred_fallthru
          _
        // Predicated region
        $region49: #{tpu_custom_call.1} parent=39 // pred_check
          %p274 = pneg %p101
        $region50: #{tpu_custom_call.1} parent=39 // pred_check_branch
          %276 = sbr.rel (%p274) target = $region52
        $region51: #{tpu_custom_call.1} parent=39 // pred_region
          %277 = dma.done [#allocation10], 8192
        $region52: #{tpu_custom_call.1} parent=39 // pred_fallthru
          _
        // Predicated region
        $region53: #{tpu_custom_call.1} parent=39 // pred_check
          %p278 = pneg %p122
        $region54: #{tpu_custom_call.1} parent=39 // pred_check_branch
          %280 = sbr.rel (%p278) target = $region56
        $region55: #{tpu_custom_call.1} parent=39 // pred_region
          %281 = dma.done [#allocation13], 2048
        $region56: #{tpu_custom_call.1} parent=39 // pred_fallthru
          _
        %s282 = sand.u32 %s46, 1
        %s283 = scalar_lea.sflag [#allocation7], %s282
        %s284 = sand.u32 %s46, 1
        %s285 = smul.addr %s284, 32
        %s286 = scalar_lea.vmem [#allocation6], %s285
        %p287 = pneg %p59
        %p288 = pneg %p56
        %p289 = pneg %p80
        %p290 = pneg %p77
        %p291 = pneg %p101
        %p292 = pneg %p98
        %p293 = pneg %p122
        %p294 = pneg %p119
        %p295 = pneg %p143
        %p296 = pneg %p140
        %p297 = pneg %p171
        %p298 = pneg %p168
        %s299 = sand.u32 %s158, 1
        %s300 = scalar_lea.sflag [#allocation8], %s299
        %s301 = sand.u32 %s158, 1
        %s302 = smul.addr %s301, 32
        %s303 = scalar_lea.vmem [#allocation14], %s302
        %s304 = smul.u32 4, %s29
        %s305 = smul.u32 4, %s29
        %p306 = scmp.eq.s32.totalorder %s29, 0
        // Predicated region
        $region57: #{tpu_custom_call.1} parent=39 // pred_check
          %p307 = pneg %p306
        $region58: #{tpu_custom_call.1} parent=39 // pred_check_branch
          %309 = sbr.rel (%p307) target = $region60
        $region59: #{tpu_custom_call.1} parent=39 // pred_region
          %310 = vst [vmem:[#allocation4] sm:$0xff] 0.0
          %311 = vst [vmem:[#allocation5] sm:$0xff] 0.0
        $region60: #{tpu_custom_call.1} parent=39 // pred_fallthru
          _
        %v312 = vld [vmem:[%s265] sm:$0xff]
        %v313 = vld [vmem:[%s265 + $0x8] sm:$0xff]
        %v314 = vld [vmem:[%s265 + $0x10] sm:$0xff]
        %v315 = vld [vmem:[%s265 + $0x18] sm:$0xff]
        %v316 = vld [vmem:[#allocation9] sm:$0xff]
        %v317 = vld [vmem:[#allocation9 + $0x8] sm:$0xff]
        %v318 = vld [vmem:[#allocation9 + $0x10] sm:$0xff]
        %v319 = vld [vmem:[#allocation9 + $0x18] sm:$0xff]
        %v320 = vld [vmem:[#allocation9 + $0x20] sm:$0xff]
        %v321 = vld [vmem:[#allocation9 + $0x28] sm:$0xff]
        %v322 = vld [vmem:[#allocation9 + $0x30] sm:$0xff]
        %v323 = vld [vmem:[#allocation9 + $0x38] sm:$0xff]
        %v324 = vld [vmem:[#allocation9 + $0x40] sm:$0xff]
        %v325 = vld [vmem:[#allocation9 + $0x48] sm:$0xff]
        %v326 = vld [vmem:[#allocation9 + $0x50] sm:$0xff]
        %v327 = vld [vmem:[#allocation9 + $0x58] sm:$0xff]
        %v328 = vld [vmem:[#allocation9 + $0x60] sm:$0xff]
        %v329 = vld [vmem:[#allocation9 + $0x68] sm:$0xff]
        %v330 = vld [vmem:[#allocation9 + $0x70] sm:$0xff]
        %v331 = vld [vmem:[#allocation9 + $0x78] sm:$0xff]
        %v332 = vld [vmem:[#allocation9 + $0x80] sm:$0xff]
        %v333 = vld [vmem:[#allocation9 + $0x88] sm:$0xff]
        %v334 = vld [vmem:[#allocation9 + $0x90] sm:$0xff]
        %v335 = vld [vmem:[#allocation9 + $0x98] sm:$0xff]
        %v336 = vld [vmem:[#allocation9 + $0xa0] sm:$0xff]
        %v337 = vld [vmem:[#allocation9 + $0xa8] sm:$0xff]
        %v338 = vld [vmem:[#allocation9 + $0xb0] sm:$0xff]
        %v339 = vld [vmem:[#allocation9 + $0xb8] sm:$0xff]
        %v340 = vld [vmem:[#allocation9 + $0xc0] sm:$0xff]
        %v341 = vld [vmem:[#allocation9 + $0xc8] sm:$0xff]
        %v342 = vld [vmem:[#allocation9 + $0xd0] sm:$0xff]
        %v343 = vld [vmem:[#allocation9 + $0xd8] sm:$0xff]
        %v344 = vld [vmem:[#allocation9 + $0xe0] sm:$0xff]
        %v345 = vld [vmem:[#allocation9 + $0xe8] sm:$0xff]
        %v346 = vld [vmem:[#allocation9 + $0xf0] sm:$0xff]
        %v347 = vld [vmem:[#allocation9 + $0xf8] sm:$0xff]
        %v348 = vld [vmem:[#allocation9 + $0x100] sm:$0xff]
        %v349 = vld [vmem:[#allocation9 + $0x108] sm:$0xff]
        %v350 = vld [vmem:[#allocation9 + $0x110] sm:$0xff]
        %v351 = vld [vmem:[#allocation9 + $0x118] sm:$0xff]
        %v352 = vld [vmem:[#allocation9 + $0x120] sm:$0xff]
        %v353 = vld [vmem:[#allocation9 + $0x128] sm:$0xff]
        %v354 = vld [vmem:[#allocation9 + $0x130] sm:$0xff]
        %v355 = vld [vmem:[#allocation9 + $0x138] sm:$0xff]
        %v356 = vld [vmem:[#allocation9 + $0x140] sm:$0xff]
        %v357 = vld [vmem:[#allocation9 + $0x148] sm:$0xff]
        %v358 = vld [vmem:[#allocation9 + $0x150] sm:$0xff]
        %v359 = vld [vmem:[#allocation9 + $0x158] sm:$0xff]
        %v360 = vld [vmem:[#allocation9 + $0x160] sm:$0xff]
        %v361 = vld [vmem:[#allocation9 + $0x168] sm:$0xff]
        %v362 = vld [vmem:[#allocation9 + $0x170] sm:$0xff]
        %v363 = vld [vmem:[#allocation9 + $0x178] sm:$0xff]
        %v364 = vld [vmem:[#allocation9 + $0x180] sm:$0xff]
        %v365 = vld [vmem:[#allocation9 + $0x188] sm:$0xff]
        %v366 = vld [vmem:[#allocation9 + $0x190] sm:$0xff]
        %v367 = vld [vmem:[#allocation9 + $0x198] sm:$0xff]
        %v368 = vld [vmem:[#allocation9 + $0x1a0] sm:$0xff]
        %v369 = vld [vmem:[#allocation9 + $0x1a8] sm:$0xff]
        %v370 = vld [vmem:[#allocation9 + $0x1b0] sm:$0xff]
        %v371 = vld [vmem:[#allocation9 + $0x1b8] sm:$0xff]
        %v372 = vld [vmem:[#allocation9 + $0x1c0] sm:$0xff]
        %v373 = vld [vmem:[#allocation9 + $0x1c8] sm:$0xff]
        %v374 = vld [vmem:[#allocation9 + $0x1d0] sm:$0xff]
        %v375 = vld [vmem:[#allocation9 + $0x1d8] sm:$0xff]
        %v376 = vld [vmem:[#allocation9 + $0x1e0] sm:$0xff]
        %v377 = vld [vmem:[#allocation9 + $0x1e8] sm:$0xff]
        %v378 = vld [vmem:[#allocation9 + $0x1f0] sm:$0xff]
        %v379 = vld [vmem:[#allocation9 + $0x1f8] sm:$0xff]
        %v380 = vld [vmem:[%s4] sm:$0xf]
        %v382 = vlaneseq
        %v383 = vshrl.u32 %v382, 7
        %v384 = vsub.s32 0, %v383
        %v385 = vrot.slane %v380, %v384
        %v386 = vlaneseq
        %v387 = vshrl.u32 %v386, 7
        %v388 = vsub.s32 1, %v387
        %v389 = vrot.slane %v380, %v388
        %v390 = vlaneseq
        %v391 = vshrl.u32 %v390, 7
        %v392 = vsub.s32 2, %v391
        %v393 = vrot.slane %v380, %v392
        %v394 = vlaneseq
        %v395 = vshrl.u32 %v394, 7
        %v396 = vsub.s32 3, %v395
        %v397 = vrot.slane %v380, %v396
        %402 = vmatprep.subr.mxu0 %v317
        %403 = vmatpush1.msra.mxu0 %v316
        %404 = vmatprep.subr.mxu0 %v321
        %405 = vmatpush1.msra.mxu0 %v320
        %406 = vmatprep.subr.mxu0 %v325
        %407 = vmatpush1.msra.mxu0 %v324
        %408 = vmatprep.subr.mxu0 %v329
        %409 = vmatpush1.msra.mxu0 %v328
        %410 = vmatprep.subr.mxu0 %v333
        %411 = vmatpush1.msra.mxu0 %v332
        %412 = vmatprep.subr.mxu0 %v337
        %413 = vmatpush1.msra.mxu0 %v336
        %414 = vmatprep.subr.mxu0 %v341
        %415 = vmatpush1.msra.mxu0 %v340
        %416 = vmatprep.subr.mxu0 %v345
        %417 = vmatpush1.msra.mxu0 %v344
        %418 = vmatprep.subr.mxu0 %v349
        %419 = vmatpush1.msra.mxu0 %v348
        %420 = vmatprep.subr.mxu0 %v353
        %421 = vmatpush1.msra.mxu0 %v352
        %422 = vmatprep.subr.mxu0 %v357
        %423 = vmatpush1.msra.mxu0 %v356
        %424 = vmatprep.subr.mxu0 %v361
        %425 = vmatpush1.msra.mxu0 %v360
        %426 = vmatprep.subr.mxu0 %v365
        %427 = vmatpush1.msra.mxu0 %v364
        %428 = vmatprep.subr.mxu0 %v369
        %429 = vmatpush1.msra.mxu0 %v368
        %430 = vmatprep.subr.mxu0 %v373
        %431 = vmatpush1.msra.mxu0 %v372
        %432 = vmatprep.subr.mxu0 %v377
        %433 = vmatpush1.msra.mxu0 %v376
        %434 = vmatprep.subr.mxu0 0.0
        %435 = vmatpush1.msra.mxu0 0.0
        %436 = vmatprep.subr.mxu0 0.0
        %437 = vmatpush1.msra.mxu0 0.0
        %438 = vmatprep.subr.mxu0 0.0
        %439 = vmatpush1.msra.mxu0 0.0
        %440 = vmatprep.subr.mxu0 0.0
        %441 = vmatpush1.msra.mxu0 0.0
        %442 = vmatprep.subr.mxu0 0.0
        %443 = vmatpush1.msra.mxu0 0.0
        %444 = vmatprep.subr.mxu0 0.0
        %445 = vmatpush1.msra.mxu0 0.0
        %446 = vmatprep.subr.mxu0 0.0
        %447 = vmatpush1.msra.mxu0 0.0
        %448 = vmatprep.subr.mxu0 0.0
        %449 = vmatpush1.msra.mxu0 0.0
        %450 = vmatprep.subr.mxu0 0.0
        %451 = vmatpush1.msra.mxu0 0.0
        %452 = vmatprep.subr.mxu0 0.0
        %453 = vmatpush1.msra.mxu0 0.0
        %454 = vmatprep.subr.mxu0 0.0
        %455 = vmatpush1.msra.mxu0 0.0
        %456 = vmatprep.subr.mxu0 0.0
        %457 = vmatpush1.msra.mxu0 0.0
        %458 = vmatprep.subr.mxu0 0.0
        %459 = vmatpush1.msra.mxu0 0.0
        %460 = vmatprep.subr.mxu0 0.0
        %461 = vmatpush1.msra.mxu0 0.0
        %462 = vmatprep.subr.mxu0 0.0
        %463 = vmatpush1.msra.mxu0 0.0
        %464 = vmatprep.subr.mxu0 0.0
        %465 = vmatpush1.msra.mxu0 0.0
        %466 = vmatprep.mubr.f32.mxu0 0.0
        %467 = vmatmul.mubr.f32.gmra.mrb[0].mxu0 %v312
        %v468 = vpop.f32.mrb[0].mxu0
        %v469 = vadd.f32 %v385, %v468
        %v470 = vpop.f32.mrb[0].mxu0
        %v471 = vadd.f32 %v389, %v470
        %472 = vmatprep.mubr.f32.mxu0 0.0
        %473 = vmatmul.mubr.f32.gmra.mrb[0].mxu0 %v313
        %v474 = vpop.f32.mrb[0].mxu0
        %v475 = vadd.f32 %v385, %v474
        %v476 = vpop.f32.mrb[0].mxu0
        %v477 = vadd.f32 %v389, %v476
        %478 = vmatprep.mubr.f32.mxu0 0.0
        %479 = vmatmul.mubr.f32.gmra.mrb[0].mxu0 %v314
        %v480 = vpop.f32.mrb[0].mxu0
        %v481 = vadd.f32 %v385, %v480
        %v482 = vpop.f32.mrb[0].mxu0
        %v483 = vadd.f32 %v389, %v482
        %484 = vmatprep.mubr.f32.mxu0 0.0
        %485 = vmatmul.mubr.f32.gmra.mrb[0].mxu0 %v315
        %v486 = vpop.f32.mrb[0].mxu0
        %v487 = vadd.f32 %v385, %v486
        %v488 = vpop.f32.mrb[0].mxu0
        %v489 = vadd.f32 %v389, %v488
        %490 = vdwg.mxu0
        %491 = vmatprep.subr.mxu0 %v319
        %492 = vmatpush1.msra.mxu0 %v318
        %493 = vmatprep.subr.mxu0 %v323
        %494 = vmatpush1.msra.mxu0 %v322
        %495 = vmatprep.subr.mxu0 %v327
        %496 = vmatpush1.msra.mxu0 %v326
        %497 = vmatprep.subr.mxu0 %v331
        %498 = vmatpush1.msra.mxu0 %v330
        %499 = vmatprep.subr.mxu0 %v335
        %500 = vmatpush1.msra.mxu0 %v334
        %501 = vmatprep.subr.mxu0 %v339
        %502 = vmatpush1.msra.mxu0 %v338
        %503 = vmatprep.subr.mxu0 %v343
        %504 = vmatpush1.msra.mxu0 %v342
        %505 = vmatprep.subr.mxu0 %v347
        %506 = vmatpush1.msra.mxu0 %v346
        %507 = vmatprep.subr.mxu0 %v351
        %508 = vmatpush1.msra.mxu0 %v350
        %509 = vmatprep.subr.mxu0 %v355
        %510 = vmatpush1.msra.mxu0 %v354
        %511 = vmatprep.subr.mxu0 %v359
        %512 = vmatpush1.msra.mxu0 %v358
        %513 = vmatprep.subr.mxu0 %v363
        %514 = vmatpush1.msra.mxu0 %v362
        %515 = vmatprep.subr.mxu0 %v367
        %516 = vmatpush1.msra.mxu0 %v366
        %517 = vmatprep.subr.mxu0 %v371
        %518 = vmatpush1.msra.mxu0 %v370
        %519 = vmatprep.subr.mxu0 %v375
        %520 = vmatpush1.msra.mxu0 %v374
        %521 = vmatprep.subr.mxu0 %v379
        %522 = vmatpush1.msra.mxu0 %v378
        %523 = vmatprep.subr.mxu0 0.0
        %524 = vmatpush1.msra.mxu0 0.0
        %525 = vmatprep.subr.mxu0 0.0
        %526 = vmatpush1.msra.mxu0 0.0
        %527 = vmatprep.subr.mxu0 0.0
        %528 = vmatpush1.msra.mxu0 0.0
        %529 = vmatprep.subr.mxu0 0.0
        %530 = vmatpush1.msra.mxu0 0.0
        %531 = vmatprep.subr.mxu0 0.0
        %532 = vmatpush1.msra.mxu0 0.0
        %533 = vmatprep.subr.mxu0 0.0
        %534 = vmatpush1.msra.mxu0 0.0
        %535 = vmatprep.subr.mxu0 0.0
        %536 = vmatpush1.msra.mxu0 0.0
        %537 = vmatprep.subr.mxu0 0.0
        %538 = vmatpush1.msra.mxu0 0.0
        %539 = vmatprep.subr.mxu0 0.0
        %540 = vmatpush1.msra.mxu0 0.0
        %541 = vmatprep.subr.mxu0 0.0
        %542 = vmatpush1.msra.mxu0 0.0
        %543 = vmatprep.subr.mxu0 0.0
        %544 = vmatpush1.msra.mxu0 0.0
        %545 = vmatprep.subr.mxu0 0.0
        %546 = vmatpush1.msra.mxu0 0.0
        %547 = vmatprep.subr.mxu0 0.0
        %548 = vmatpush1.msra.mxu0 0.0
        %549 = vmatprep.subr.mxu0 0.0
        %550 = vmatpush1.msra.mxu0 0.0
        %551 = vmatprep.subr.mxu0 0.0
        %552 = vmatpush1.msra.mxu0 0.0
        %553 = vmatprep.subr.mxu0 0.0
        %554 = vmatpush1.msra.mxu0 0.0
        %555 = vmatprep.mubr.f32.mxu0 0.0
        %556 = vmatmul.mubr.f32.gmra.mrb[0].mxu0 %v312
        %v557 = vpop.f32.mrb[0].mxu0
        %v558 = vadd.f32 %v393, %v557
        %v559 = vpop.f32.mrb[0].mxu0
        %v560 = vadd.f32 %v397, %v559
        %561 = vmatprep.mubr.f32.mxu0 0.0
        %562 = vmatmul.mubr.f32.gmra.mrb[0].mxu0 %v313
        %v563 = vpop.f32.mrb[0].mxu0
        %v564 = vadd.f32 %v393, %v563
        %v565 = vpop.f32.mrb[0].mxu0
        %v566 = vadd.f32 %v397, %v565
        %567 = vmatprep.mubr.f32.mxu0 0.0
        %568 = vmatmul.mubr.f32.gmra.mrb[0].mxu0 %v314
        %v569 = vpop.f32.mrb[0].mxu0
        %v570 = vadd.f32 %v393, %v569
        %v571 = vpop.f32.mrb[0].mxu0
        %v572 = vadd.f32 %v397, %v571
        %573 = vmatprep.mubr.f32.mxu0 0.0
        %574 = vmatmul.mubr.f32.gmra.mrb[0].mxu0 %v315
        %v575 = vpop.f32.mrb[0].mxu0
        %v576 = vadd.f32 %v393, %v575
        %v577 = vpop.f32.mrb[0].mxu0
        %v578 = vadd.f32 %v397, %v577
        %579 = vdwg.mxu0
        %580 = vst [vmem:[#allocation2] sm:$0xff] %v469
        %581 = vst [vmem:[#allocation2 + $0x8] sm:$0xff] %v471
        %582 = vst [vmem:[#allocation2 + $0x10] sm:$0xff] %v558
        %583 = vst [vmem:[#allocation2 + $0x18] sm:$0xff] %v560
        %584 = vst [vmem:[#allocation2 + $0x20] sm:$0xff] %v475
        %585 = vst [vmem:[#allocation2 + $0x28] sm:$0xff] %v477
        %586 = vst [vmem:[#allocation2 + $0x30] sm:$0xff] %v564
        %587 = vst [vmem:[#allocation2 + $0x38] sm:$0xff] %v566
        %588 = vst [vmem:[#allocation2 + $0x40] sm:$0xff] %v481
        %589 = vst [vmem:[#allocation2 + $0x48] sm:$0xff] %v483
        %590 = vst [vmem:[#allocation2 + $0x50] sm:$0xff] %v570
        %591 = vst [vmem:[#allocation2 + $0x58] sm:$0xff] %v572
        %592 = vst [vmem:[#allocation2 + $0x60] sm:$0xff] %v487
        %593 = vst [vmem:[#allocation2 + $0x68] sm:$0xff] %v489
        %594 = vst [vmem:[#allocation2 + $0x70] sm:$0xff] %v576
        %595 = vst [vmem:[#allocation2 + $0x78] sm:$0xff] %v578
        loop: start=0, step=1, limit=4
        $region61: #{tpu_custom_call.1} parent=39 // loop_pre_header
          _
        $region62: #{tpu_custom_call.1} parent=39 // loop_header
          %s597 = sphi 0, %s601
          %p598 = scmp.ge.s32.totalorder %s597, 4
        $region63: #{tpu_custom_call.1} parent=39 // loop_header_branch
          %600 = sbr.rel (%p598) target = $region67
        $region64: #{tpu_custom_call.1} parent=39 // loop_body
          %v602 = vld [vmem:[#allocation4] sm:$0xff]
          %s603 = smul.u32 %s597, 4
          %s604 = smul.addr %s603, 8
          %s605 = scalar_lea.vmem [#allocation2], %s604
          %v606 = vld [vmem:[%s605] sm:$0xff]
          %v607 = vld [vmem:[%s605 + $0x8] sm:$0xff]
          %v608 = vld [vmem:[%s605 + $0x10] sm:$0xff]
          %v609 = vld [vmem:[%s605 + $0x18] sm:$0xff]
          %v610 = vld [vmem:[#allocation11] sm:$0xff]
          %v611 = vld [vmem:[#allocation11 + $0x8] sm:$0xff]
          %v612 = vld [vmem:[#allocation11 + $0x10] sm:$0xff]
          %v613 = vld [vmem:[#allocation11 + $0x18] sm:$0xff]
          %v614 = vld [vmem:[#allocation11 + $0x20] sm:$0xff]
          %v615 = vld [vmem:[#allocation11 + $0x28] sm:$0xff]
          %v616 = vld [vmem:[#allocation11 + $0x30] sm:$0xff]
          %v617 = vld [vmem:[#allocation11 + $0x38] sm:$0xff]
          %v618 = vld [vmem:[#allocation11 + $0x40] sm:$0xff]
          %v619 = vld [vmem:[#allocation11 + $0x48] sm:$0xff]
          %v620 = vld [vmem:[#allocation11 + $0x50] sm:$0xff]
          %v621 = vld [vmem:[#allocation11 + $0x58] sm:$0xff]
          %v622 = vld [vmem:[#allocation11 + $0x60] sm:$0xff]
          %v623 = vld [vmem:[#allocation11 + $0x68] sm:$0xff]
          %v624 = vld [vmem:[#allocation11 + $0x70] sm:$0xff]
          %v625 = vld [vmem:[#allocation11 + $0x78] sm:$0xff]
          %v626 = vld [vmem:[#allocation11 + $0x80] sm:$0xff]
          %v627 = vld [vmem:[#allocation11 + $0x88] sm:$0xff]
          %v628 = vld [vmem:[#allocation11 + $0x90] sm:$0xff]
          %v629 = vld [vmem:[#allocation11 + $0x98] sm:$0xff]
          %v630 = vld [vmem:[#allocation11 + $0xa0] sm:$0xff]
          %v631 = vld [vmem:[#allocation11 + $0xa8] sm:$0xff]
          %v632 = vld [vmem:[#allocation11 + $0xb0] sm:$0xff]
          %v633 = vld [vmem:[#allocation11 + $0xb8] sm:$0xff]
          %v634 = vld [vmem:[#allocation11 + $0xc0] sm:$0xff]
          %v635 = vld [vmem:[#allocation11 + $0xc8] sm:$0xff]
          %v636 = vld [vmem:[#allocation11 + $0xd0] sm:$0xff]
          %v637 = vld [vmem:[#allocation11 + $0xd8] sm:$0xff]
          %v638 = vld [vmem:[#allocation11 + $0xe0] sm:$0xff]
          %v639 = vld [vmem:[#allocation11 + $0xe8] sm:$0xff]
          %v640 = vld [vmem:[#allocation11 + $0xf0] sm:$0xff]
          %v641 = vld [vmem:[#allocation11 + $0xf8] sm:$0xff]
          %v642 = vld [vmem:[#allocation11 + $0x100] sm:$0xff]
          %v643 = vld [vmem:[#allocation11 + $0x108] sm:$0xff]
          %v644 = vld [vmem:[#allocation11 + $0x110] sm:$0xff]
          %v645 = vld [vmem:[#allocation11 + $0x118] sm:$0xff]
          %v646 = vld [vmem:[#allocation11 + $0x120] sm:$0xff]
          %v647 = vld [vmem:[#allocation11 + $0x128] sm:$0xff]
          %v648 = vld [vmem:[#allocation11 + $0x130] sm:$0xff]
          %v649 = vld [vmem:[#allocation11 + $0x138] sm:$0xff]
          %v650 = vld [vmem:[#allocation11 + $0x140] sm:$0xff]
          %v651 = vld [vmem:[#allocation11 + $0x148] sm:$0xff]
          %v652 = vld [vmem:[#allocation11 + $0x150] sm:$0xff]
          %v653 = vld [vmem:[#allocation11 + $0x158] sm:$0xff]
          %v654 = vld [vmem:[#allocation11 + $0x160] sm:$0xff]
          %v655 = vld [vmem:[#allocation11 + $0x168] sm:$0xff]
          %v656 = vld [vmem:[#allocation11 + $0x170] sm:$0xff]
          %v657 = vld [vmem:[#allocation11 + $0x178] sm:$0xff]
          %v658 = vld [vmem:[#allocation11 + $0x180] sm:$0xff]
          %v659 = vld [vmem:[#allocation11 + $0x188] sm:$0xff]
          %v660 = vld [vmem:[#allocation11 + $0x190] sm:$0xff]
          %v661 = vld [vmem:[#allocation11 + $0x198] sm:$0xff]
          %v662 = vld [vmem:[#allocation11 + $0x1a0] sm:$0xff]
          %v663 = vld [vmem:[#allocation11 + $0x1a8] sm:$0xff]
          %v664 = vld [vmem:[#allocation11 + $0x1b0] sm:$0xff]
          %v665 = vld [vmem:[#allocation11 + $0x1b8] sm:$0xff]
          %v666 = vld [vmem:[#allocation11 + $0x1c0] sm:$0xff]
          %v667 = vld [vmem:[#allocation11 + $0x1c8] sm:$0xff]
          %v668 = vld [vmem:[#allocation11 + $0x1d0] sm:$0xff]
          %v669 = vld [vmem:[#allocation11 + $0x1d8] sm:$0xff]
          %v670 = vld [vmem:[#allocation11 + $0x1e0] sm:$0xff]
          %v671 = vld [vmem:[#allocation11 + $0x1e8] sm:$0xff]
          %v672 = vld [vmem:[#allocation11 + $0x1f0] sm:$0xff]
          %v673 = vld [vmem:[#allocation11 + $0x1f8] sm:$0xff]
          %674 = vmatprep.subr.mxu0 %v611
          %675 = vmatpush1.msra.mxu0 %v610
          %676 = vmatprep.subr.mxu0 %v615
          %677 = vmatpush1.msra.mxu0 %v614
          %678 = vmatprep.subr.mxu0 %v619
          %679 = vmatpush1.msra.mxu0 %v618
          %680 = vmatprep.subr.mxu0 %v623
          %681 = vmatpush1.msra.mxu0 %v622
          %682 = vmatprep.subr.mxu0 %v627
          %683 = vmatpush1.msra.mxu0 %v626
          %684 = vmatprep.subr.mxu0 %v631
          %685 = vmatpush1.msra.mxu0 %v630
          %686 = vmatprep.subr.mxu0 %v635
          %687 = vmatpush1.msra.mxu0 %v634
          %688 = vmatprep.subr.mxu0 %v639
          %689 = vmatpush1.msra.mxu0 %v638
          %690 = vmatprep.subr.mxu0 %v643
          %691 = vmatpush1.msra.mxu0 %v642
          %692 = vmatprep.subr.mxu0 %v647
          %693 = vmatpush1.msra.mxu0 %v646
          %694 = vmatprep.subr.mxu0 %v651
          %695 = vmatpush1.msra.mxu0 %v650
          %696 = vmatprep.subr.mxu0 %v655
          %697 = vmatpush1.msra.mxu0 %v654
          %698 = vmatprep.subr.mxu0 %v659
          %699 = vmatpush1.msra.mxu0 %v658
          %700 = vmatprep.subr.mxu0 %v663
          %701 = vmatpush1.msra.mxu0 %v662
          %702 = vmatprep.subr.mxu0 %v667
          %703 = vmatpush1.msra.mxu0 %v666
          %704 = vmatprep.subr.mxu0 %v671
          %705 = vmatpush1.msra.mxu0 %v670
          %706 = vmatprep.subr.mxu0 0.0
          %707 = vmatpush1.msra.mxu0 0.0
          %708 = vmatprep.subr.mxu0 0.0
          %709 = vmatpush1.msra.mxu0 0.0
          %710 = vmatprep.subr.mxu0 0.0
          %711 = vmatpush1.msra.mxu0 0.0
          %712 = vmatprep.subr.mxu0 0.0
          %713 = vmatpush1.msra.mxu0 0.0
          %714 = vmatprep.subr.mxu0 0.0
          %715 = vmatpush1.msra.mxu0 0.0
          %716 = vmatprep.subr.mxu0 0.0
          %717 = vmatpush1.msra.mxu0 0.0
          %718 = vmatprep.subr.mxu0 0.0
          %719 = vmatpush1.msra.mxu0 0.0
          %720 = vmatprep.subr.mxu0 0.0
          %721 = vmatpush1.msra.mxu0 0.0
          %722 = vmatprep.subr.mxu0 0.0
          %723 = vmatpush1.msra.mxu0 0.0
          %724 = vmatprep.subr.mxu0 0.0
          %725 = vmatpush1.msra.mxu0 0.0
          %726 = vmatprep.subr.mxu0 0.0
          %727 = vmatpush1.msra.mxu0 0.0
          %728 = vmatprep.subr.mxu0 0.0
          %729 = vmatpush1.msra.mxu0 0.0
          %730 = vmatprep.subr.mxu0 0.0
          %731 = vmatpush1.msra.mxu0 0.0
          %732 = vmatprep.subr.mxu0 0.0
          %733 = vmatpush1.msra.mxu0 0.0
          %734 = vmatprep.subr.mxu0 0.0
          %735 = vmatpush1.msra.mxu0 0.0
          %736 = vmatprep.subr.mxu0 0.0
          %737 = vmatpush1.msra.mxu0 0.0
          %738 = vmatprep.mubr.f32.mxu0 0.0
          %739 = vmatmul.mubr.f32.gmra.mrb[0].mxu0 %v602
          %v740 = vpop.f32.mrb[0].mxu0
          %v741 = vadd.f32 0.0, %v740
          %v742 = vpop.f32.mrb[0].mxu0
          %v743 = vadd.f32 0.0, %v742
          %744 = vdwg.mxu0
          %745 = vmatprep.subr.mxu0 %v613
          %746 = vmatpush1.msra.mxu0 %v612
          %747 = vmatprep.subr.mxu0 %v617
          %748 = vmatpush1.msra.mxu0 %v616
          %749 = vmatprep.subr.mxu0 %v621
          %750 = vmatpush1.msra.mxu0 %v620
          %751 = vmatprep.subr.mxu0 %v625
          %752 = vmatpush1.msra.mxu0 %v624
          %753 = vmatprep.subr.mxu0 %v629
          %754 = vmatpush1.msra.mxu0 %v628
          %755 = vmatprep.subr.mxu0 %v633
          %756 = vmatpush1.msra.mxu0 %v632
          %757 = vmatprep.subr.mxu0 %v637
          %758 = vmatpush1.msra.mxu0 %v636
          %759 = vmatprep.subr.mxu0 %v641
          %760 = vmatpush1.msra.mxu0 %v640
          %761 = vmatprep.subr.mxu0 %v645
          %762 = vmatpush1.msra.mxu0 %v644
          %763 = vmatprep.subr.mxu0 %v649
          %764 = vmatpush1.msra.mxu0 %v648
          %765 = vmatprep.subr.mxu0 %v653
          %766 = vmatpush1.msra.mxu0 %v652
          %767 = vmatprep.subr.mxu0 %v657
          %768 = vmatpush1.msra.mxu0 %v656
          %769 = vmatprep.subr.mxu0 %v661
          %770 = vmatpush1.msra.mxu0 %v660
          %771 = vmatprep.subr.mxu0 %v665
          %772 = vmatpush1.msra.mxu0 %v664
          %773 = vmatprep.subr.mxu0 %v669
          %774 = vmatpush1.msra.mxu0 %v668
          %775 = vmatprep.subr.mxu0 %v673
          %776 = vmatpush1.msra.mxu0 %v672
          %777 = vmatprep.subr.mxu0 0.0
          %778 = vmatpush1.msra.mxu0 0.0
          %779 = vmatprep.subr.mxu0 0.0
          %780 = vmatpush1.msra.mxu0 0.0
          %781 = vmatprep.subr.mxu0 0.0
          %782 = vmatpush1.msra.mxu0 0.0
          %783 = vmatprep.subr.mxu0 0.0
          %784 = vmatpush1.msra.mxu0 0.0
          %785 = vmatprep.subr.mxu0 0.0
          %786 = vmatpush1.msra.mxu0 0.0
          %787 = vmatprep.subr.mxu0 0.0
          %788 = vmatpush1.msra.mxu0 0.0
          %789 = vmatprep.subr.mxu0 0.0
          %790 = vmatpush1.msra.mxu0 0.0
          %791 = vmatprep.subr.mxu0 0.0
          %792 = vmatpush1.msra.mxu0 0.0
          %793 = vmatprep.subr.mxu0 0.0
          %794 = vmatpush1.msra.mxu0 0.0
          %795 = vmatprep.subr.mxu0 0.0
          %796 = vmatpush1.msra.mxu0 0.0
          %797 = vmatprep.subr.mxu0 0.0
          %798 = vmatpush1.msra.mxu0 0.0
          %799 = vmatprep.subr.mxu0 0.0
          %800 = vmatpush1.msra.mxu0 0.0
          %801 = vmatprep.subr.mxu0 0.0
          %802 = vmatpush1.msra.mxu0 0.0
          %803 = vmatprep.subr.mxu0 0.0
          %804 = vmatpush1.msra.mxu0 0.0
          %805 = vmatprep.subr.mxu0 0.0
          %806 = vmatpush1.msra.mxu0 0.0
          %807 = vmatprep.subr.mxu0 0.0
          %808 = vmatpush1.msra.mxu0 0.0
          %809 = vmatprep.mubr.f32.mxu0 0.0
          %810 = vmatmul.mubr.f32.gmra.mrb[0].mxu0 %v602
          %v811 = vpop.f32.mrb[0].mxu0
          %v812 = vadd.f32 0.0, %v811
          %v813 = vpop.f32.mrb[0].mxu0
          %v814 = vadd.f32 0.0, %v813
          %815 = vdwg.mxu0
          %v816 = vadd.f32 %v606, %v741
          %v817 = vadd.f32 %v607, %v743
          %v818 = vadd.f32 %v608, %v812
          %v819 = vadd.f32 %v609, %v814
          %v820 = vxor.u32 %v816, 2147483648
          %v821 = vmul.f32 %v820, 1.442695
          %v822 = vpow.pop %v821
          %v823 = vadd.f32 %v822, 1.0
          %v824 = vrcp.pop %v823
          %v825 = vmul.f32 1.0, %v824
          %v826 = vxor.u32 %v817, 2147483648
          %v827 = vmul.f32 %v826, 1.442695
          %v828 = vpow.pop %v827
          %v829 = vadd.f32 %v828, 1.0
          %v830 = vrcp.pop %v829
          %v831 = vmul.f32 1.0, %v830
          %v832 = vtanh.pop %v818
          %v833 = vxor.u32 %v819, 2147483648
          %v834 = vmul.f32 %v833, 1.442695
          %v835 = vpow.pop %v834
          %v836 = vadd.f32 %v835, 1.0
          %v837 = vrcp.pop %v836
          %v838 = vmul.f32 1.0, %v837
          %v839 = vld [vmem:[#allocation5] sm:$0xff]
          %v840 = vmul.f32 %v831, %v839
          %v841 = vmul.f32 %v825, %v832
          %v842 = vadd.f32 %v840, %v841
          %v843 = vtanh.pop %v842
          %v844 = vmul.f32 %v838, %v843
          %845 = vst [vmem:[#allocation5] sm:$0xff] %v842
          %846 = vst [vmem:[#allocation4] sm:$0xff] %v844
          %s847 = smul.u32 %s597, 8
          %s848 = scalar_lea.vmem [#allocation3], %s847
          %849 = vst [vmem:[%s848] sm:$0xff] %v844
        $region65: #{tpu_custom_call.1} parent=39 // loop_footer
          %s601 = sadd.s32 1, %s597
        $region66: #{tpu_custom_call.1} parent=39 // loop_footer_branch
          %596 = sbr.rel target = $region62
        $region67: #{tpu_custom_call.1} parent=39 // loop_exit
          _
        %v850 = vld [vmem:[#allocation3] sm:$0xff]
        %v851 = vld [vmem:[#allocation3 + $0x8] sm:$0xff]
        %v852 = vld [vmem:[#allocation3 + $0x10] sm:$0xff]
        %v853 = vld [vmem:[#allocation3 + $0x18] sm:$0xff]
        %v854 = vld [vmem:[#allocation12] sm:$0xff]
        %v855 = vld [vmem:[#allocation12 + $0x8] sm:$0xff]
        %v856 = vld [vmem:[#allocation12 + $0x10] sm:$0xff]
        %v857 = vld [vmem:[#allocation12 + $0x18] sm:$0xff]
        %v858 = vld [vmem:[#allocation12 + $0x20] sm:$0xff]
        %v859 = vld [vmem:[#allocation12 + $0x28] sm:$0xff]
        %v860 = vld [vmem:[#allocation12 + $0x30] sm:$0xff]
        %v861 = vld [vmem:[#allocation12 + $0x38] sm:$0xff]
        %v862 = vld [vmem:[#allocation12 + $0x40] sm:$0xff]
        %v863 = vld [vmem:[#allocation12 + $0x48] sm:$0xff]
        %v864 = vld [vmem:[#allocation12 + $0x50] sm:$0xff]
        %v865 = vld [vmem:[#allocation12 + $0x58] sm:$0xff]
        %v866 = vld [vmem:[#allocation12 + $0x60] sm:$0xff]
        %v867 = vld [vmem:[#allocation12 + $0x68] sm:$0xff]
        %v868 = vld [vmem:[#allocation12 + $0x70] sm:$0xff]
        %v869 = vld [vmem:[#allocation12 + $0x78] sm:$0xff]
        %870 = vmatprep.subr.mxu0 0.0
        %871 = vmatpush1.msra.mxu0 %v854
        %872 = vmatprep.subr.mxu0 0.0
        %873 = vmatpush1.msra.mxu0 %v855
        %874 = vmatprep.subr.mxu0 0.0
        %875 = vmatpush1.msra.mxu0 %v856
        %876 = vmatprep.subr.mxu0 0.0
        %877 = vmatpush1.msra.mxu0 %v857
        %878 = vmatprep.subr.mxu0 0.0
        %879 = vmatpush1.msra.mxu0 %v858
        %880 = vmatprep.subr.mxu0 0.0
        %881 = vmatpush1.msra.mxu0 %v859
        %882 = vmatprep.subr.mxu0 0.0
        %883 = vmatpush1.msra.mxu0 %v860
        %884 = vmatprep.subr.mxu0 0.0
        %885 = vmatpush1.msra.mxu0 %v861
        %886 = vmatprep.subr.mxu0 0.0
        %887 = vmatpush1.msra.mxu0 %v862
        %888 = vmatprep.subr.mxu0 0.0
        %889 = vmatpush1.msra.mxu0 %v863
        %890 = vmatprep.subr.mxu0 0.0
        %891 = vmatpush1.msra.mxu0 %v864
        %892 = vmatprep.subr.mxu0 0.0
        %893 = vmatpush1.msra.mxu0 %v865
        %894 = vmatprep.subr.mxu0 0.0
        %895 = vmatpush1.msra.mxu0 %v866
        %896 = vmatprep.subr.mxu0 0.0
        %897 = vmatpush1.msra.mxu0 %v867
        %898 = vmatprep.subr.mxu0 0.0
        %899 = vmatpush1.msra.mxu0 %v868
        %900 = vmatprep.subr.mxu0 0.0
        %901 = vmatpush1.msra.mxu0 %v869
        %902 = vmatprep.subr.mxu0 0.0
        %903 = vmatpush1.msra.mxu0 0.0
        %904 = vmatprep.subr.mxu0 0.0
        %905 = vmatpush1.msra.mxu0 0.0
        %906 = vmatprep.subr.mxu0 0.0
        %907 = vmatpush1.msra.mxu0 0.0
        %908 = vmatprep.subr.mxu0 0.0
        %909 = vmatpush1.msra.mxu0 0.0
        %910 = vmatprep.subr.mxu0 0.0
        %911 = vmatpush1.msra.mxu0 0.0
        %912 = vmatprep.subr.mxu0 0.0
        %913 = vmatpush1.msra.mxu0 0.0
        %914 = vmatprep.subr.mxu0 0.0
        %915 = vmatpush1.msra.mxu0 0.0
        %916 = vmatprep.subr.mxu0 0.0
        %917 = vmatpush1.msra.mxu0 0.0
        %918 = vmatprep.subr.mxu0 0.0
        %919 = vmatpush1.msra.mxu0 0.0
        %920 = vmatprep.subr.mxu0 0.0
        %921 = vmatpush1.msra.mxu0 0.0
        %922 = vmatprep.subr.mxu0 0.0
        %923 = vmatpush1.msra.mxu0 0.0
        %924 = vmatprep.subr.mxu0 0.0
        %925 = vmatpush1.msra.mxu0 0.0
        %926 = vmatprep.subr.mxu0 0.0
        %927 = vmatpush1.msra.mxu0 0.0
        %928 = vmatprep.subr.mxu0 0.0
        %929 = vmatpush1.msra.mxu0 0.0
        %930 = vmatprep.subr.mxu0 0.0
        %931 = vmatpush1.msra.mxu0 0.0
        %932 = vmatprep.subr.mxu0 0.0
        %933 = vmatpush1.msra.mxu0 0.0
        %934 = vmatprep.mubr.f32.mxu0 0.0
        %935 = vmatmul.mubr.f32.gmra.mrb[0].mxu0 %v850
        %v936 = vpop.f32.mrb[0].mxu0
        %v937 = vadd.f32 0.0, %v936
        %v938 = vpop.f32.mrb[0].mxu0
        %939 = vmatprep.mubr.f32.mxu0 0.0
        %940 = vmatmul.mubr.f32.gmra.mrb[0].mxu0 %v851
        %v941 = vpop.f32.mrb[0].mxu0
        %v942 = vadd.f32 0.0, %v941
        %v943 = vpop.f32.mrb[0].mxu0
        %944 = vmatprep.mubr.f32.mxu0 0.0
        %945 = vmatmul.mubr.f32.gmra.mrb[0].mxu0 %v852
        %v946 = vpop.f32.mrb[0].mxu0
        %v947 = vadd.f32 0.0, %v946
        %v948 = vpop.f32.mrb[0].mxu0
        %949 = vmatprep.mubr.f32.mxu0 0.0
        %950 = vmatmul.mubr.f32.gmra.mrb[0].mxu0 %v853
        %v951 = vpop.f32.mrb[0].mxu0
        %v952 = vadd.f32 0.0, %v951
        %v953 = vpop.f32.mrb[0].mxu0
        %954 = vdwg.mxu0
        %955 = vst [vmem:[%s303] sm:$0xff] %v937
        %956 = vst [vmem:[%s303 + $0x8] sm:$0xff] %v942
        %957 = vst [vmem:[%s303 + $0x10] sm:$0xff] %v947
        %958 = vst [vmem:[%s303 + $0x18] sm:$0xff] %v952
        %s959 = sand.u32 %s158, 1
        %s960 = scalar_lea.sflag [#allocation8], %s959
        %s961 = sand.u32 %s158, 1
        %s962 = smul.addr %s961, 32
        %s963 = scalar_lea.vmem [#allocation14], %s962
        // Predicated region
        $region68: #{tpu_custom_call.1} parent=39 // pred_check
          %p964 = pneg %p168
        $region69: #{tpu_custom_call.1} parent=39 // pred_check_branch
          %966 = sbr.rel (%p964) target = $region71
        $region70: #{tpu_custom_call.1} parent=39 // pred_region
          %s967 = smul.u32 4, %s29
          %s969 = ssub.s32 512, 512
          %970 = vsyncadd %s960, %s969
          %s971 = sadd.s32 %s28, %s967
          %s972 = smul.addr %s971, 128
          %s973 = scalar_lea.hbm %s5, %s972
          %s974 = sshll.u32 %s963, 4
          %s975 = int_to_ptr.vmem [resolvable:$true] %s974
          %980 = dma.vmem_to_hbm [thread:$0]  %s975, 512, %s973, %s960, 128, 128, 8
        $region71: #{tpu_custom_call.1} parent=39 // pred_fallthru
          _
      $region40: #{tpu_custom_call.1} parent=5 // pred_fallthru
        _
      %p981 = scmp.le.s32.totalorder 2, %s19
      // Predicated region
      $region72: #{tpu_custom_call.1} parent=5 // pred_check
        %p982 = pneg %p981
      $region73: #{tpu_custom_call.1} parent=5 // pred_check_branch
        %984 = sbr.rel (%p982) target = $region75
      $region74: #{tpu_custom_call.1} parent=5 // pred_region
        %s985 = ssub.s32 %s19, 2
        // Predicated region
        $region76: #{tpu_custom_call.1} parent=74 // pred_check
          %p986 = pneg %p174
        $region77: #{tpu_custom_call.1} parent=74 // pred_check_branch
          %988 = sbr.rel (%p986) target = $region79
        $region78: #{tpu_custom_call.1} parent=74 // pred_region
          %s989 = sand.u32 %s159, 1
          %s990 = scalar_lea.sflag [#allocation8], %s989
          %s991 = sand.u32 %s159, 1
          %s992 = smul.addr %s991, 32
          %s993 = scalar_lea.vmem [#allocation14], %s992
          %994 = dma.done %s990, 512
        $region79: #{tpu_custom_call.1} parent=74 // pred_fallthru
          _
      $region75: #{tpu_custom_call.1} parent=5 // pred_fallthru
        _
    $region6: #{tpu_custom_call.1} parent=1 // loop_footer
      %s23 = sadd.s32 1, %s19
    $region7: #{tpu_custom_call.1} parent=1 // loop_footer_branch
      %18 = sbr.rel target = $region3
    $region8: #{tpu_custom_call.1} parent=1 // loop_exit
      _
    %995 = vsyncpa [#allocation7], 1
    %s996 = scalar_lea.sflag [#allocation7], 1
    %997 = vsyncpa %s996, 1
    %998 = vsyncpa [#allocation10], 1
    %999 = vsyncpa [#allocation13], 1
    %1000 = vsyncpa [#allocation8], 1
    %s1001 = scalar_lea.sflag [#allocation8], 1
    %1002 = vsyncpa %s1001, 1

</llo_original>
